<compile_context>
chip_gen: v7x
topology: tpu7x:2x2x1
jax: 0.10.0
libtpu: 0.0.40
codegen_flags: <defaults>
</compile_context>

<pallas_src>
import jax
import jax.numpy as jnp
import numpy as np
from jax import lax
from jax.experimental import pallas as pl
from jax.experimental.pallas import tpu as pltpu


def _round_up(n, m):
    return ((n + m - 1) // m) * m


# ----------------------------------------------------------------------------
# Kernel
# ----------------------------------------------------------------------------
def _make_transition_kernel(num_hidden, dim_out):
    """Fused MLP trunk + fused (mu | log_std) head.

    Ref order: x, (W_i bf16, b_i f32) * num_hidden, W_head f32, b_head f32, out.
    out[:, :dim_out] = mu ;  out[:, dim_out:] = exp(log_std)
    """

    def kernel(x_ref, *refs):
        n_param = 2 * num_hidden + 2
        params = refs[:n_param]
        out_ref = refs[n_param]

        h = x_ref[...]                       # bf16 (tb, dim_in) MXU operand
        h32 = h.astype(jnp.float32)          # f32 copy for the head matmul
        for layer in range(num_hidden):
            w = params[2 * layer][...]       # bf16 (prev, h)
            b = params[2 * layer + 1][...]   # f32  (1, h)
            z = jnp.dot(h, w, preferred_element_type=jnp.float32) + b
            h32 = jnp.maximum(z, 0.0)        # ReLU in f32
            h = h32.astype(jnp.bfloat16)     # bf16 operand for next MXU pass

        w_head = params[2 * num_hidden][...]       # f32 (prev, 2*dim_out)
        b_head = params[2 * num_hidden + 1][...]   # f32 (1, 2*dim_out)
        # f32-operand head matmul (tiny): keeps exp(log_std) accurate.
        z = jnp.dot(h32, w_head, preferred_element_type=jnp.float32) + b_head
        cols = lax.broadcasted_iota(jnp.int32, z.shape, 1)
        out_ref[...] = jnp.where(cols < dim_out, z, jnp.exp(z)).astype(out_ref.dtype)

    return kernel


# ----------------------------------------------------------------------------
# Wrapper helpers
# ----------------------------------------------------------------------------
def prepare_transition_params(hidden_params, mu_params, log_std_params):
    """Pre-cast / pre-fuse parameters ONCE, outside the hot path.

    hidden_params: list of (W:(in,h), b:(h,) or (1,h))
    mu_params / log_std_params: (W:(h_last,dim_out), b)
    Returns a flat tuple: (W_0 bf16, b_0 f32, ..., W_head f32, b_head f32).
    """
    prepared = []
    for w, b in hidden_params:
        prepared.append(jnp.asarray(w, jnp.bfloat16))
        prepared.append(jnp.asarray(b, jnp.float32).reshape(1, -1))
    w_mu, b_mu = mu_params
    w_ls, b_ls = log_std_params
    w_head = jnp.concatenate(
        [jnp.asarray(w_mu, jnp.float32), jnp.asarray(w_ls, jnp.float32)], axis=1)
    b_head = jnp.concatenate(
        [jnp.asarray(b_mu, jnp.float32).reshape(1, -1),
         jnp.asarray(b_ls, jnp.float32).reshape(1, -1)], axis=1)
    prepared += [w_head, b_head]
    return tuple(prepared)


def _pick_batch_tile(B, max_tile=512):
    if B < 32:
        return _round_up(B, 8)           # tiny batch: one grid step is fine
    # Keep >= 2 grid steps so v7x's two TensorCores both get work, and keep
    # the tile a multiple of 16 (bf16 sublane packing).
    tb = _round_up(pl.cdiv(B, 2), 16)
    return min(tb, max_tile)


def _vmem_limit_bytes(dim_in, hiddens, dim_out, tb, weight_bufs, stream_depth):
    w_bytes = 0
    prev = dim_in
    for h in hiddens:
        w_bytes += prev * h * 2 + h * 4          # bf16 W + f32 b
        prev = h
    w_bytes += prev * (2 * dim_out) * 4 + (2 * dim_out) * 4   # f32 fused head
    resident = w_bytes * weight_bufs
    streamed = stream_depth * (tb * dim_in * 2 + tb * (2 * dim_out) * 4)
    need = resident + streamed
    if resident > (40 << 20):
        # TODO(synk): stream weights (layer-chunked emit_pipeline) once the
        # resident weight set no longer fits v7x's 64 MiB VMEM.
        return min(need + (8 << 20), 100 << 20)
    return max(16 << 20, min(int(need * 1.5) + (4 << 20), 48 << 20))


def _build_call(Bp, dim_in, hiddens, dim_out, tb, single_buffer_weights, stream_depth):
    num_hidden = len(hiddens)
    kernel = _make_transition_kernel(num_hidden, dim_out)

    def spec(shape, index_map, depth):
        if depth is None:
            return pl.BlockSpec(shape, index_map)
        return pl.BlockSpec(shape, index_map, pipeline_mode=pl.Buffered(depth))

    w_depth = 1 if single_buffer_weights else None   # resident, single-buffered
    in_specs = [spec((tb, dim_in), lambda i: (i, 0), stream_depth)]   # x
    prev = dim_in
    for h in hiddens:
        in_specs.append(spec((prev, h), lambda i: (0, 0), w_depth))   # W_i
        in_specs.append(spec((1, h), lambda i: (0, 0), w_depth))      # b_i
        prev = h
    in_specs.append(spec((prev, 2 * dim_out), lambda i: (0, 0), w_depth))  # W_head
    in_specs.append(spec((1, 2 * dim_out), lambda i: (0, 0), w_depth))     # b_head

    out_specs = spec((tb, 2 * dim_out), lambda i: (i, 0), stream_depth)
    out_shape = jax.ShapeDtypeStruct((Bp, 2 * dim_out), jnp.float32)

    vmem = _vmem_limit_bytes(dim_in, hiddens, dim_out, tb,
                             1 if single_buffer_weights else 2,
                             stream_depth if stream_depth else 2)

    return pl.pallas_call(
        kernel,
        out_shape=out_shape,
        grid_spec=pltpu.PrefetchScalarGridSpec(
            num_scalar_prefetch=0,
            grid=(Bp // tb,),
            in_specs=in_specs,
            out_specs=out_specs,
        ),
        compiler_params=pltpu.CompilerParams(
            dimension_semantics=("parallel",),
            vmem_limit_bytes=vmem,
        ),
    )


# First (single_buffer_weights, stream_depth) config that lowered OK on this
# jax version -- probed once, cached for every later call.
_CONFIG_CACHE = []


def _candidate_configs():
    if _CONFIG_CACHE:
        return [_CONFIG_CACHE[0]]
    cands = []
    if hasattr(pl, "Buffered"):
        cands.append((True, 3))     # resident weights + 3-deep streamed x/out
        cands.append((True, None))  # resident weights + default depth
    cands.append((False, None))     # all default double-buffering
    return cands


def transition_forward(x, prepared_params, *, tb=None):
    """Pallas Transition.forward. Returns (mu, std) with std = exp(log_std)."""
    B, dim_in = x.shape
    num_hidden = (len(prepared_params) - 2) // 2
    hiddens = tuple(int(prepared_params[2 * i].shape[1]) for i in range(num_hidden))
    dim_out = int(prepared_params[-2].shape[1]) // 2

    if tb is None:
        tb = _pick_batch_tile(B)
    Bp = _round_up(B, tb)

    x_bf16 = x.astype(jnp.bfloat16)
    if Bp != B:
        x_bf16 = jnp.pad(x_bf16, ((0, Bp - B), (0, 0)))   # zero-padded tail tile

    last_exc = None
    for cfg in _candidate_configs():
        single_w, depth = cfg
        try:
            call = _build_call(Bp, dim_in, hiddens, dim_out, tb, single_w, depth)
            fused = call(x_bf16, *prepared_params)         # (Bp, 2*dim_out) f32
            if not _CONFIG_CACHE:
                _CONFIG_CACHE.append(cfg)
            mu = fused[:B, :dim_out]
            std = fused[:B, dim_out:]
            return mu, std
        except Exception as exc:  # pragma: no cover - jax-version fallback
            last_exc = exc
    raise last_exc


# ----------------------------------------------------------------------------
# Pure-JAX references
# ----------------------------------------------------------------------------
def _transition_ref_f32(x, hidden_params, mu_params, log_std_params):
    h = x
    for w, b in hidden_params:
        h = jnp.maximum(h @ w + b.reshape(1, -1), 0.0)
    mu = h @ mu_params[0] + mu_params[1].reshape(1, -1)
    std = jnp.exp(h @ log_std_params[0] + log_std_params[1].reshape(1, -1))
    return mu, std


def _transition_ref_mixed(x, hidden_params, mu_params, log_std_params):
    """Mirrors the kernel: bf16-operand hidden matmuls, f32-operand heads."""
    h = x.astype(jnp.bfloat16)
    h32 = x.astype(jnp.float32)
    for w, b in hidden_params:
        z = jnp.dot(h, w.astype(jnp.bfloat16),
                    preferred_element_type=jnp.float32) + b.reshape(1, -1)
        h32 = jnp.maximum(z, 0.0)
        h = h32.astype(jnp.bfloat16)
    mu = h32 @ mu_params[0] + mu_params[1].reshape(1, -1)
    log_std = h32 @ log_std_params[0] + log_std_params[1].reshape(1, -1)
    return mu, jnp.exp(log_std)


# ----------------------------------------------------------------------------
# Self-test
# ----------------------------------------------------------------------------
if __name__ == "__main__":
    dim_in, hiddens, dim_out = 16, (32, 32), 8

    key = jax.random.PRNGKey(0)
    keys = jax.random.split(key, 2 * len(hiddens) + 6)

    hidden_params = []
    in_d = dim_in
    kidx = 0
    for h in hiddens:
        w = jax.random.normal(keys[kidx], (in_d, h), jnp.float32) / np.sqrt(in_d)
        b = jax.random.normal(keys[kidx + 1], (1, h), jnp.float32) * 0.1
        hidden_params.append((w, b))
        in_d = h
        kidx += 2
    w_mu = jax.random.normal(keys[kidx], (in_d, dim_out), jnp.float32) / np.sqrt(in_d)
    b_mu = jax.random.normal(keys[kidx + 1], (1, dim_out), jnp.float32) * 0.1
    w_ls = jax.random.normal(keys[kidx + 2], (in_d, dim_out), jnp.float32) / np.sqrt(in_d)
    b_ls = jax.random.normal(keys[kidx + 3], (1, dim_out), jnp.float32) * 0.1

    prepared = prepare_transition_params(hidden_params, (w_mu, b_mu), (w_ls, b_ls))

    def check(B, xkey):
        x = jax.random.normal(xkey, (B, dim_in), jnp.float32)
        mu, std = transition_forward(x, prepared)
        jax.block_until_ready((mu, std))

        mu_m, std_m = _transition_ref_mixed(x, hidden_params, (w_mu, b_mu), (w_ls, b_ls))
        np.testing.assert_allclose(np.asarray(mu), np.asarray(mu_m), rtol=5e-3, atol=5e-3)
        np.testing.assert_allclose(np.asarray(std), np.asarray(std_m), rtol=5e-3, atol=5e-3)

        mu_f, std_f = _transition_ref_f32(x, hidden_params, (w_mu, b_mu), (w_ls, b_ls))
        np.testing.assert_allclose(np.asarray(mu), np.asarray(mu_f), rtol=5e-2, atol=5e-2)
        np.testing.assert_allclose(np.asarray(std), np.asarray(std_f), rtol=5e-2, atol=5e-2)

        assert mu.shape == (B, dim_out) and std.shape == (B, dim_out)
        assert bool(jnp.all(std > 0.0))

    check(8, keys[kidx + 4])     # tiny batch, single grid step
    check(100, keys[kidx + 5])   # awkward batch: padded tail tile, 2-step grid

    print("KERNEL_OK")
</pallas_src>

<mosaic_0001>
module attributes {stable_mosaic.version = 11 : i64} {
  func.func @kernel(%arg0: i32, %arg1: memref<8x16xbf16, #tpu.memory_space<vmem>>, %arg2: memref<16x32xbf16, #tpu.memory_space<vmem>>, %arg3: memref<1x32xf32, #tpu.memory_space<vmem>>, %arg4: memref<32x32xbf16, #tpu.memory_space<vmem>>, %arg5: memref<1x32xf32, #tpu.memory_space<vmem>>, %arg6: memref<32x16xf32, #tpu.memory_space<vmem>>, %arg7: memref<1x16xf32, #tpu.memory_space<vmem>>, %arg8: memref<8x16xf32, #tpu.memory_space<vmem>>) attributes {dimension_semantics = [#tpu.dimension_semantics<parallel>], iteration_bounds = array<i64: 1>, scalar_prefetch = 0 : i64, scratch_operands = 0 : i64, tpu.core_type = #tpu.core_type<tc>, window_params = [{transform_indices = @transform_0, window_bounds = array<i64: 8, 16>}, {pipeline_mode = #tpu.pipeline_mode<synchronous>, transform_indices = @transform_1, window_bounds = array<i64: 16, 32>}, {pipeline_mode = #tpu.pipeline_mode<synchronous>, transform_indices = @transform_2, window_bounds = array<i64: 1, 32>}, {pipeline_mode = #tpu.pipeline_mode<synchronous>, transform_indices = @transform_3, window_bounds = array<i64: 32, 32>}, {pipeline_mode = #tpu.pipeline_mode<synchronous>, transform_indices = @transform_4, window_bounds = array<i64: 1, 32>}, {pipeline_mode = #tpu.pipeline_mode<synchronous>, transform_indices = @transform_5, window_bounds = array<i64: 32, 16>}, {pipeline_mode = #tpu.pipeline_mode<synchronous>, transform_indices = @transform_6, window_bounds = array<i64: 1, 16>}, {transform_indices = @transform_7, window_bounds = array<i64: 8, 16>}]} {
    %c0 = arith.constant 0 : index
    %c0_0 = arith.constant 0 : index
    %0 = vector.load %arg1[%c0, %c0_0] : memref<8x16xbf16, #tpu.memory_space<vmem>>, vector<8x16xbf16>
    %c0_1 = arith.constant 0 : index
    %c0_2 = arith.constant 0 : index
    %1 = vector.load %arg2[%c0_1, %c0_2] : memref<16x32xbf16, #tpu.memory_space<vmem>>, vector<16x32xbf16>
    %c0_3 = arith.constant 0 : index
    %c0_4 = arith.constant 0 : index
    %2 = vector.load %arg3[%c0_3, %c0_4] : memref<1x32xf32, #tpu.memory_space<vmem>>, vector<1x32xf32>
    %cst = arith.constant dense<0.000000e+00> : vector<8x32xf32>
    %3 = tpu.matmul %0, %1, %cst {dimension_numbers = #tpu.dot_dimension_numbers<[1], [0], [0], [1], [0, 0, 1, 1], [], []>} : vector<8x16xbf16>, vector<16x32xbf16>, vector<8x32xf32> -> vector<8x32xf32>
    %4 = vector.broadcast %2 : vector<1x32xf32> to vector<8x32xf32>
    %5 = arith.addf %3, %4 : vector<8x32xf32>
    %cst_5 = arith.constant 0.000000e+00 : f32
    %6 = vector.broadcast %cst_5 : f32 to vector<8x32xf32>
    %7 = arith.maximumf %5, %6 : vector<8x32xf32>
    %8 = arith.truncf %7 : vector<8x32xf32> to vector<8x32xbf16>
    %c0_6 = arith.constant 0 : index
    %c0_7 = arith.constant 0 : index
    %9 = vector.load %arg4[%c0_6, %c0_7] : memref<32x32xbf16, #tpu.memory_space<vmem>>, vector<32x32xbf16>
    %c0_8 = arith.constant 0 : index
    %c0_9 = arith.constant 0 : index
    %10 = vector.load %arg5[%c0_8, %c0_9] : memref<1x32xf32, #tpu.memory_space<vmem>>, vector<1x32xf32>
    %cst_10 = arith.constant dense<0.000000e+00> : vector<8x32xf32>
    %11 = tpu.matmul %8, %9, %cst_10 {dimension_numbers = #tpu.dot_dimension_numbers<[1], [0], [0], [1], [0, 0, 1, 1], [], []>} : vector<8x32xbf16>, vector<32x32xbf16>, vector<8x32xf32> -> vector<8x32xf32>
    %12 = vector.broadcast %10 : vector<1x32xf32> to vector<8x32xf32>
    %13 = arith.addf %11, %12 : vector<8x32xf32>
    %cst_11 = arith.constant 0.000000e+00 : f32
    %14 = vector.broadcast %cst_11 : f32 to vector<8x32xf32>
    %15 = arith.maximumf %13, %14 : vector<8x32xf32>
    %c0_12 = arith.constant 0 : index
    %c0_13 = arith.constant 0 : index
    %16 = vector.load %arg6[%c0_12, %c0_13] : memref<32x16xf32, #tpu.memory_space<vmem>>, vector<32x16xf32>
    %c0_14 = arith.constant 0 : index
    %c0_15 = arith.constant 0 : index
    %17 = vector.load %arg7[%c0_14, %c0_15] : memref<1x16xf32, #tpu.memory_space<vmem>>, vector<1x16xf32>
    %cst_16 = arith.constant dense<0.000000e+00> : vector<8x16xf32>
    %18 = tpu.matmul %15, %16, %cst_16 {dimension_numbers = #tpu.dot_dimension_numbers<[1], [0], [0], [1], [0, 0, 1, 1], [], []>} : vector<8x32xf32>, vector<32x16xf32>, vector<8x16xf32> -> vector<8x16xf32>
    %19 = vector.broadcast %17 : vector<1x16xf32> to vector<8x16xf32>
    %20 = arith.addf %18, %19 : vector<8x16xf32>
    %21 = tpu.iota {dimensions = array<i32: 1>} : vector<8x16xi32>
    %c8_i32 = arith.constant 8 : i32
    %22 = vector.broadcast %c8_i32 : i32 to vector<8x16xi32>
    %23 = arith.cmpi slt, %21, %22 : vector<8x16xi32>
    %24 = math.exp %20 : vector<8x16xf32>
    %25 = arith.select %23, %20, %24 : vector<8x16xi1>, vector<8x16xf32>
    %c0_17 = arith.constant 0 : index
    %c0_18 = arith.constant 0 : index
    %26 = vector.load %arg8[%c0_17, %c0_18] : memref<8x16xf32, #tpu.memory_space<vmem>>, vector<8x16xf32>
    tpu.vector_store %arg8[%c0_17, %c0_18], %25 {strides = array<i32>} : memref<8x16xf32, #tpu.memory_space<vmem>>, vector<8x16xf32>,
    return
  }
  func.func @transform_0(%arg0: i32) -> (i32, i32) {
    %c0_i32 = arith.constant 0 : i32
    %c0_i32_0 = arith.constant 0 : i32
    return %arg0, %c0_i32 : i32, i32
  }
  func.func @transform_1(%arg0: i32) -> (i32, i32) {
    %c0_i32 = arith.constant 0 : i32
    %c0_i32_0 = arith.constant 0 : i32
    %c0_i32_1 = arith.constant 0 : i32
    return %c0_i32, %c0_i32_0 : i32, i32
  }
  func.func @transform_2(%arg0: i32) -> (i32, i32) {
    %c0_i32 = arith.constant 0 : i32
    %c0_i32_0 = arith.constant 0 : i32
    %c0_i32_1 = arith.constant 0 : i32
    return %c0_i32, %c0_i32_0 : i32, i32
  }
  func.func @transform_3(%arg0: i32) -> (i32, i32) {
    %c0_i32 = arith.constant 0 : i32
    %c0_i32_0 = arith.constant 0 : i32
    %c0_i32_1 = arith.constant 0 : i32
    return %c0_i32, %c0_i32_0 : i32, i32
  }
  func.func @transform_4(%arg0: i32) -> (i32, i32) {
    %c0_i32 = arith.constant 0 : i32
    %c0_i32_0 = arith.constant 0 : i32
    %c0_i32_1 = arith.constant 0 : i32
    return %c0_i32, %c0_i32_0 : i32, i32
  }
  func.func @transform_5(%arg0: i32) -> (i32, i32) {
    %c0_i32 = arith.constant 0 : i32
    %c0_i32_0 = arith.constant 0 : i32
    %c0_i32_1 = arith.constant 0 : i32
    return %c0_i32, %c0_i32_0 : i32, i32
  }
  func.func @transform_6(%arg0: i32) -> (i32, i32) {
    %c0_i32 = arith.constant 0 : i32
    %c0_i32_0 = arith.constant 0 : i32
    %c0_i32_1 = arith.constant 0 : i32
    return %c0_i32, %c0_i32_0 : i32, i32
  }
  func.func @transform_7(%arg0: i32) -> (i32, i32) {
    %c0_i32 = arith.constant 0 : i32
    %c0_i32_0 = arith.constant 0 : i32
    return %arg0, %c0_i32 : i32, i32
  }
}

module attributes {stable_mosaic.version = 11 : i64} {
  func.func @kernel(%arg0: i32, %arg1: memref<8x16xbf16, #tpu.memory_space<vmem>>, %arg2: memref<16x32xbf16, #tpu.memory_space<vmem>>, %arg3: memref<1x32xf32, #tpu.memory_space<vmem>>, %arg4: memref<32x32xbf16, #tpu.memory_space<vmem>>, %arg5: memref<1x32xf32, #tpu.memory_space<vmem>>, %arg6: memref<32x16xf32, #tpu.memory_space<vmem>>, %arg7: memref<1x16xf32, #tpu.memory_space<vmem>>, %arg8: memref<8x16xf32, #tpu.memory_space<vmem>>) attributes {dimension_semantics = [#tpu.dimension_semantics<parallel>], iteration_bounds = array<i64: 1>, scalar_prefetch = 0 : i64, scratch_operands = 0 : i64, tpu.core_type = #tpu.core_type<tc>, window_params = [{transform_indices = @transform_0, window_bounds = array<i64: 8, 16>}, {pipeline_mode = #tpu.pipeline_mode<synchronous>, transform_indices = @transform_1, window_bounds = array<i64: 16, 32>}, {pipeline_mode = #tpu.pipeline_mode<synchronous>, transform_indices = @transform_2, window_bounds = array<i64: 1, 32>}, {pipeline_mode = #tpu.pipeline_mode<synchronous>, transform_indices = @transform_3, window_bounds = array<i64: 32, 32>}, {pipeline_mode = #tpu.pipeline_mode<synchronous>, transform_indices = @transform_4, window_bounds = array<i64: 1, 32>}, {pipeline_mode = #tpu.pipeline_mode<synchronous>, transform_indices = @transform_5, window_bounds = array<i64: 32, 16>}, {pipeline_mode = #tpu.pipeline_mode<synchronous>, transform_indices = @transform_6, window_bounds = array<i64: 1, 16>}, {transform_indices = @transform_7, window_bounds = array<i64: 8, 16>}]} {
    %c0 = arith.constant 0 : index
    %c0_0 = arith.constant 0 : index
    %0 = vector.load %arg1[%c0, %c0_0] : memref<8x16xbf16, #tpu.memory_space<vmem>>, vector<8x16xbf16>
    %c0_1 = arith.constant 0 : index
    %c0_2 = arith.constant 0 : index
    %1 = vector.load %arg2[%c0_1, %c0_2] : memref<16x32xbf16, #tpu.memory_space<vmem>>, vector<16x32xbf16>
    %c0_3 = arith.constant 0 : index
    %c0_4 = arith.constant 0 : index
    %2 = vector.load %arg3[%c0_3, %c0_4] : memref<1x32xf32, #tpu.memory_space<vmem>>, vector<1x32xf32>
    %cst = arith.constant dense<0.000000e+00> : vector<8x32xf32>
    %3 = tpu.matmul %0, %1, %cst {dimension_numbers = #tpu.dot_dimension_numbers<[1], [0], [0], [1], [0, 0, 1, 1], [], []>} : vector<8x16xbf16>, vector<16x32xbf16>, vector<8x32xf32> -> vector<8x32xf32>
    %4 = vector.broadcast %2 : vector<1x32xf32> to vector<8x32xf32>
    %5 = arith.addf %3, %4 : vector<8x32xf32>
    %cst_5 = arith.constant 0.000000e+00 : f32
    %6 = vector.broadcast %cst_5 : f32 to vector<8x32xf32>
    %7 = arith.maximumf %5, %6 : vector<8x32xf32>
    %8 = arith.truncf %7 : vector<8x32xf32> to vector<8x32xbf16>
    %c0_6 = arith.constant 0 : index
    %c0_7 = arith.constant 0 : index
    %9 = vector.load %arg4[%c0_6, %c0_7] : memref<32x32xbf16, #tpu.memory_space<vmem>>, vector<32x32xbf16>
    %c0_8 = arith.constant 0 : index
    %c0_9 = arith.constant 0 : index
    %10 = vector.load %arg5[%c0_8, %c0_9] : memref<1x32xf32, #tpu.memory_space<vmem>>, vector<1x32xf32>
    %cst_10 = arith.constant dense<0.000000e+00> : vector<8x32xf32>
    %11 = tpu.matmul %8, %9, %cst_10 {dimension_numbers = #tpu.dot_dimension_numbers<[1], [0], [0], [1], [0, 0, 1, 1], [], []>} : vector<8x32xbf16>, vector<32x32xbf16>, vector<8x32xf32> -> vector<8x32xf32>
    %12 = vector.broadcast %10 : vector<1x32xf32> to vector<8x32xf32>
    %13 = arith.addf %11, %12 : vector<8x32xf32>
    %cst_11 = arith.constant 0.000000e+00 : f32
    %14 = vector.broadcast %cst_11 : f32 to vector<8x32xf32>
    %15 = arith.maximumf %13, %14 : vector<8x32xf32>
    %c0_12 = arith.constant 0 : index
    %c0_13 = arith.constant 0 : index
    %16 = vector.load %arg6[%c0_12, %c0_13] : memref<32x16xf32, #tpu.memory_space<vmem>>, vector<32x16xf32>
    %c0_14 = arith.constant 0 : index
    %c0_15 = arith.constant 0 : index
    %17 = vector.load %arg7[%c0_14, %c0_15] : memref<1x16xf32, #tpu.memory_space<vmem>>, vector<1x16xf32>
    %cst_16 = arith.constant dense<0.000000e+00> : vector<8x16xf32>
    %18 = tpu.matmul %15, %16, %cst_16 {dimension_numbers = #tpu.dot_dimension_numbers<[1], [0], [0], [1], [0, 0, 1, 1], [], []>} : vector<8x32xf32>, vector<32x16xf32>, vector<8x16xf32> -> vector<8x16xf32>
    %19 = vector.broadcast %17 : vector<1x16xf32> to vector<8x16xf32>
    %20 = arith.addf %18, %19 : vector<8x16xf32>
    %21 = tpu.iota {dimensions = array<i32: 1>} : vector<8x16xi32>
    %c8_i32 = arith.constant 8 : i32
    %22 = vector.broadcast %c8_i32 : i32 to vector<8x16xi32>
    %23 = arith.cmpi slt, %21, %22 : vector<8x16xi32>
    %24 = math.exp %20 : vector<8x16xf32>
    %25 = arith.select %23, %20, %24 : vector<8x16xi1>, vector<8x16xf32>
    %c0_17 = arith.constant 0 : index
    %c0_18 = arith.constant 0 : index
    %26 = vector.load %arg8[%c0_17, %c0_18] : memref<8x16xf32, #tpu.memory_space<vmem>>, vector<8x16xf32>
    tpu.vector_store %arg8[%c0_17, %c0_18], %25 {strides = array<i32>} : memref<8x16xf32, #tpu.memory_space<vmem>>, vector<8x16xf32>,
    return
  }
  func.func @transform_0(%arg0: i32) -> (i32, i32) {
    %c0_i32 = arith.constant 0 : i32
    %c0_i32_0 = arith.constant 0 : i32
    return %arg0, %c0_i32 : i32, i32
  }
  func.func @transform_1(%arg0: i32) -> (i32, i32) {
    %c0_i32 = arith.constant 0 : i32
    %c0_i32_0 = arith.constant 0 : i32
    %c0_i32_1 = arith.constant 0 : i32
    return %c0_i32, %c0_i32_0 : i32, i32
  }
  func.func @transform_2(%arg0: i32) -> (i32, i32) {
    %c0_i32 = arith.constant 0 : i32
    %c0_i32_0 = arith.constant 0 : i32
    %c0_i32_1 = arith.constant 0 : i32
    return %c0_i32, %c0_i32_0 : i32, i32
  }
  func.func @transform_3(%arg0: i32) -> (i32, i32) {
    %c0_i32 = arith.constant 0 : i32
    %c0_i32_0 = arith.constant 0 : i32
    %c0_i32_1 = arith.constant 0 : i32
    return %c0_i32, %c0_i32_0 : i32, i32
  }
  func.func @transform_4(%arg0: i32) -> (i32, i32) {
    %c0_i32 = arith.constant 0 : i32
    %c0_i32_0 = arith.constant 0 : i32
    %c0_i32_1 = arith.constant 0 : i32
    return %c0_i32, %c0_i32_0 : i32, i32
  }
  func.func @transform_5(%arg0: i32) -> (i32, i32) {
    %c0_i32 = arith.constant 0 : i32
    %c0_i32_0 = arith.constant 0 : i32
    %c0_i32_1 = arith.constant 0 : i32
    return %c0_i32, %c0_i32_0 : i32, i32
  }
  func.func @transform_6(%arg0: i32) -> (i32, i32) {
    %c0_i32 = arith.constant 0 : i32
    %c0_i32_0 = arith.constant 0 : i32
    %c0_i32_1 = arith.constant 0 : i32
    return %c0_i32, %c0_i32_0 : i32, i32
  }
  func.func @transform_7(%arg0: i32) -> (i32, i32) {
    %c0_i32 = arith.constant 0 : i32
    %c0_i32_0 = arith.constant 0 : i32
    return %arg0, %c0_i32 : i32, i32
  }
}

</mosaic_0001>

<llo_original>
// kernel: tpu_custom_call.1
$region0: #{tpu_custom_call.1}
  #allocation0 [shape = 'u32[]', space=smem, size = 0x4, offset = 0x4, fixed_abs, tag = 'smem constant byte address 0x4 - core index']
  #allocation1 [shape = 'u32[144,128]{1,0:T(1,128)}', space=vmem, size = 0x12000, scoped, tag = 'internal scratch']
  %s0 = inlined_call_operand.vmem [shape: bf16[8,16], index: 0, kind: input, shape index: {}]
  %s1 = inlined_call_operand.vmem [shape: bf16[16,32], index: 1, kind: input, shape index: {}]
  %s2 = inlined_call_operand.vmem [shape: f32[1,32], index: 2, kind: input, shape index: {}]
  %s3 = inlined_call_operand.vmem [shape: bf16[32,32], index: 3, kind: input, shape index: {}]
  %s4 = inlined_call_operand.vmem [shape: f32[1,32], index: 4, kind: input, shape index: {}]
  %s5 = inlined_call_operand.vmem [shape: f32[32,16], index: 5, kind: input, shape index: {}]
  %s6 = inlined_call_operand.vmem [shape: f32[1,16], index: 6, kind: input, shape index: {}]
  %s7 = inlined_call_operand.hbm [shape: f32[8,16], index: 7, kind: output, shape index: {}]
  %s8 = sld [smem:[#allocation0]]
  $region38: #{tpu_custom_call.1} parent=0
    _
  %s10 = ssub.s32 1, %s8
  %s11 = scalar_select 0, %s10, %s8
  $region1: #{tpu_custom_call.1} parent=0
    #allocation2 [shape = 'u8[4096]{0}', space=vmem, size = 0x1000, scoped, tag = 'output window, operand 0, single buffered']
    #allocation3 [shape = 's32[1]{0}', space=sflag, size = 0x4, scoped, tag = 'scoped memory for tpu_custom_call.1']
    %12 = vsyncpa [#allocation3], 0
    // Predicated region
    $region2: #{tpu_custom_call.1} parent=1 // pred_check
      _
    $region3: #{tpu_custom_call.1} parent=1 // pred_check_branch
      %14 = sbr.rel (0) target = $region5
    $region4: #{tpu_custom_call.1} parent=1 // pred_region
      _
    $region5: #{tpu_custom_call.1} parent=1 // pred_fallthru
      _
    // Predicated region
    $region6: #{tpu_custom_call.1} parent=1 // pred_check
      _
    $region7: #{tpu_custom_call.1} parent=1 // pred_check_branch
      %16 = sbr.rel (0) target = $region9
    $region8: #{tpu_custom_call.1} parent=1 // pred_region
      _
    $region9: #{tpu_custom_call.1} parent=1 // pred_fallthru
      _
    // Predicated region
    $region10: #{tpu_custom_call.1} parent=1 // pred_check
      _
    $region11: #{tpu_custom_call.1} parent=1 // pred_check_branch
      %18 = sbr.rel (0) target = $region13
    $region12: #{tpu_custom_call.1} parent=1 // pred_region
      _
    $region13: #{tpu_custom_call.1} parent=1 // pred_fallthru
      _
    // Predicated region
    $region14: #{tpu_custom_call.1} parent=1 // pred_check
      _
    $region15: #{tpu_custom_call.1} parent=1 // pred_check_branch
      %20 = sbr.rel (0) target = $region17
    $region16: #{tpu_custom_call.1} parent=1 // pred_region
      _
    $region17: #{tpu_custom_call.1} parent=1 // pred_fallthru
      _
    // Predicated region
    $region18: #{tpu_custom_call.1} parent=1 // pred_check
      _
    $region19: #{tpu_custom_call.1} parent=1 // pred_check_branch
      %22 = sbr.rel (0) target = $region21
    $region20: #{tpu_custom_call.1} parent=1 // pred_region
      _
    $region21: #{tpu_custom_call.1} parent=1 // pred_fallthru
      _
    // Predicated region
    $region22: #{tpu_custom_call.1} parent=1 // pred_check
      _
    $region23: #{tpu_custom_call.1} parent=1 // pred_check_branch
      %24 = sbr.rel (0) target = $region25
    $region24: #{tpu_custom_call.1} parent=1 // pred_region
      _
    $region25: #{tpu_custom_call.1} parent=1 // pred_fallthru
      _
    // Predicated region
    $region26: #{tpu_custom_call.1} parent=1 // pred_check
      _
    $region27: #{tpu_custom_call.1} parent=1 // pred_check_branch
      %26 = sbr.rel (0) target = $region29
    $region28: #{tpu_custom_call.1} parent=1 // pred_region
      _
    $region29: #{tpu_custom_call.1} parent=1 // pred_fallthru
      _
    %v28 = vld [vmem:[%s0] sm:$0xf]
    %v29 = vld [vmem:[%s1] sm:$0xf]
    %v30 = vld [vmem:[%s1 + $0x4] sm:$0xf]
    %v31 = vld [vmem:[%s2] sm:$0x1]
    %v33 = vlaneseq
    %v34 = vshrl.u32 %v33, 7
    %v35 = vsub.s32 0, %v34
    %v36 = vrot.slane %v31, %v35
    %v40 = vunpack.c.l.b16 %v29
    %v41 = vunpack.c.l.b16 %v30
    %v42 = vpack.c.b16 %v41, %v40
    %vm44 = vcmask 130048
    %v46 = vsel %vm44, %v28, 0
    %48 = vmatprep.subr.bf16.mxu0 0
    %49 = vmatpush1.bf16.msra.mxu0 %v42
    %50 = vmatprep.subr.bf16.mxu0 0
    %51 = vmatpush1.bf16.msra.mxu0 0
    %52 = vmatprep.subr.bf16.mxu0 0
    %53 = vmatpush1.bf16.msra.mxu0 0
    %54 = vmatprep.subr.bf16.mxu0 0
    %55 = vmatpush1.bf16.msra.mxu0 0
    %56 = vmatprep.subr.bf16.mxu0 0
    %57 = vmatpush1.bf16.msra.mxu0 0
    %58 = vmatprep.subr.bf16.mxu0 0
    %59 = vmatpush1.bf16.msra.mxu0 0
    %60 = vmatprep.subr.bf16.mxu0 0
    %61 = vmatpush1.bf16.msra.mxu0 0
    %62 = vmatprep.subr.bf16.mxu0 0
    %63 = vmatpush1.bf16.msra.mxu0 0
    %64 = vmatprep.subr.bf16.mxu0 0
    %65 = vmatpush1.bf16.msra.mxu0 0
    %66 = vmatprep.subr.bf16.mxu0 0
    %67 = vmatpush1.bf16.msra.mxu0 0
    %68 = vmatprep.subr.bf16.mxu0 0
    %69 = vmatpush1.bf16.msra.mxu0 0
    %70 = vmatprep.subr.bf16.mxu0 0
    %71 = vmatpush1.bf16.msra.mxu0 0
    %72 = vmatprep.subr.bf16.mxu0 0
    %73 = vmatpush1.bf16.msra.mxu0 0
    %74 = vmatprep.subr.bf16.mxu0 0
    %75 = vmatpush1.bf16.msra.mxu0 0
    %76 = vmatprep.subr.bf16.mxu0 0
    %77 = vmatpush1.bf16.msra.mxu0 0
    %78 = vmatprep.subr.bf16.mxu0 0
    %79 = vmatpush1.bf16.msra.mxu0 0
    %80 = vmatprep.mubr.bf16.mxu0 0
    %81 = vmatmul.mubr.bf16.gmra.mrb[0].mxu0 %v46
    %v82 = vpop.f32.mrb[0].mxu0
    %v83 = vadd.f32 %v36, %v82
    %v84 = vpop.f32.mrb[0].mxu0
    %v85 = vpop.f32.mrb[0].mxu0
    %v86 = vpop.f32.mrb[0].mxu0
    %87 = vdwg.mxu0
    %v88 = vmax.f32 %v83, 0.0
    %v89 = vpack.c.bf16 %v88, %v88
    %v90 = vld [vmem:[%s3] sm:$0xf]
    %v91 = vld [vmem:[%s3 + $0x4] sm:$0xf]
    %v92 = vld [vmem:[%s3 + $0x8] sm:$0xf]
    %v93 = vld [vmem:[%s3 + $0xc] sm:$0xf]
    %v94 = vld [vmem:[%s4] sm:$0x1]
    %v96 = vlaneseq
    %v97 = vshrl.u32 %v96, 7
    %v98 = vsub.s32 0, %v97
    %v99 = vrot.slane %v94, %v98
    %v105 = vunpack.c.l.b16 %v90
    %v106 = vunpack.c.l.b16 %v91
    %v107 = vunpack.c.l.b16 %v92
    %v108 = vunpack.c.l.b16 %v93
    %v109 = vpack.c.b16 %v106, %v105
    %v110 = vpack.c.b16 %v108, %v107
    %vm113 = vcmask 261120
    %v115 = vsel %vm113, %v89, 0
    %117 = vmatprep.subr.bf16.mxu0 0
    %118 = vmatpush1.bf16.msra.mxu0 %v109
    %119 = vmatprep.subr.bf16.mxu0 0
    %120 = vmatpush1.bf16.msra.mxu0 %v110
    %121 = vmatprep.subr.bf16.mxu0 0
    %122 = vmatpush1.bf16.msra.mxu0 0
    %123 = vmatprep.subr.bf16.mxu0 0
    %124 = vmatpush1.bf16.msra.mxu0 0
    %125 = vmatprep.subr.bf16.mxu0 0
    %126 = vmatpush1.bf16.msra.mxu0 0
    %127 = vmatprep.subr.bf16.mxu0 0
    %128 = vmatpush1.bf16.msra.mxu0 0
    %129 = vmatprep.subr.bf16.mxu0 0
    %130 = vmatpush1.bf16.msra.mxu0 0
    %131 = vmatprep.subr.bf16.mxu0 0
    %132 = vmatpush1.bf16.msra.mxu0 0
    %133 = vmatprep.subr.bf16.mxu0 0
    %134 = vmatpush1.bf16.msra.mxu0 0
    %135 = vmatprep.subr.bf16.mxu0 0
    %136 = vmatpush1.bf16.msra.mxu0 0
    %137 = vmatprep.subr.bf16.mxu0 0
    %138 = vmatpush1.bf16.msra.mxu0 0
    %139 = vmatprep.subr.bf16.mxu0 0
    %140 = vmatpush1.bf16.msra.mxu0 0
    %141 = vmatprep.subr.bf16.mxu0 0
    %142 = vmatpush1.bf16.msra.mxu0 0
    %143 = vmatprep.subr.bf16.mxu0 0
    %144 = vmatpush1.bf16.msra.mxu0 0
    %145 = vmatprep.subr.bf16.mxu0 0
    %146 = vmatpush1.bf16.msra.mxu0 0
    %147 = vmatprep.subr.bf16.mxu0 0
    %148 = vmatpush1.bf16.msra.mxu0 0
    %149 = vmatprep.mubr.bf16.mxu0 0
    %150 = vmatmul.mubr.bf16.gmra.mrb[0].mxu0 %v115
    %v151 = vpop.f32.mrb[0].mxu0
    %v152 = vadd.f32 %v99, %v151
    %v153 = vpop.f32.mrb[0].mxu0
    %v154 = vpop.f32.mrb[0].mxu0
    %v155 = vpop.f32.mrb[0].mxu0
    %156 = vdwg.mxu0
    %v157 = vmax.f32 %v152, 0.0
    %v158 = vld [vmem:[%s5] sm:$0xff]
    %v159 = vld [vmem:[%s5 + $0x8] sm:$0xff]
    %v160 = vld [vmem:[%s5 + $0x10] sm:$0xff]
    %v161 = vld [vmem:[%s5 + $0x18] sm:$0xff]
    %v162 = vld [vmem:[%s6] sm:$0x1]
    %v164 = vlaneseq
    %v165 = vshrl.u32 %v164, 7
    %v166 = vsub.s32 0, %v165
    %v167 = vrot.slane %v162, %v166
    %v170 = vsel %vm113, %v157, 0
    %172 = vmatprep.subr.mxu0 0.0
    %173 = vmatpush1.msra.mxu0 %v158
    %174 = vmatprep.subr.mxu0 0.0
    %175 = vmatpush1.msra.mxu0 %v159
    %176 = vmatprep.subr.mxu0 0.0
    %177 = vmatpush1.msra.mxu0 %v160
    %178 = vmatprep.subr.mxu0 0.0
    %179 = vmatpush1.msra.mxu0 %v161
    %180 = vmatprep.subr.mxu0 0.0
    %181 = vmatpush1.msra.mxu0 0.0
    %182 = vmatprep.subr.mxu0 0.0
    %183 = vmatpush1.msra.mxu0 0.0
    %184 = vmatprep.subr.mxu0 0.0
    %185 = vmatpush1.msra.mxu0 0.0
    %186 = vmatprep.subr.mxu0 0.0
    %187 = vmatpush1.msra.mxu0 0.0
    %188 = vmatprep.subr.mxu0 0.0
    %189 = vmatpush1.msra.mxu0 0.0
    %190 = vmatprep.subr.mxu0 0.0
    %191 = vmatpush1.msra.mxu0 0.0
    %192 = vmatprep.subr.mxu0 0.0
    %193 = vmatpush1.msra.mxu0 0.0
    %194 = vmatprep.subr.mxu0 0.0
    %195 = vmatpush1.msra.mxu0 0.0
    %196 = vmatprep.subr.mxu0 0.0
    %197 = vmatpush1.msra.mxu0 0.0
    %198 = vmatprep.subr.mxu0 0.0
    %199 = vmatpush1.msra.mxu0 0.0
    %200 = vmatprep.subr.mxu0 0.0
    %201 = vmatpush1.msra.mxu0 0.0
    %202 = vmatprep.subr.mxu0 0.0
    %203 = vmatpush1.msra.mxu0 0.0
    %204 = vmatprep.subr.mxu0 0.0
    %205 = vmatpush1.msra.mxu0 0.0
    %206 = vmatprep.subr.mxu0 0.0
    %207 = vmatpush1.msra.mxu0 0.0
    %208 = vmatprep.subr.mxu0 0.0
    %209 = vmatpush1.msra.mxu0 0.0
    %210 = vmatprep.subr.mxu0 0.0
    %211 = vmatpush1.msra.mxu0 0.0
    %212 = vmatprep.subr.mxu0 0.0
    %213 = vmatpush1.msra.mxu0 0.0
    %214 = vmatprep.subr.mxu0 0.0
    %215 = vmatpush1.msra.mxu0 0.0
    %216 = vmatprep.subr.mxu0 0.0
    %217 = vmatpush1.msra.mxu0 0.0
    %218 = vmatprep.subr.mxu0 0.0
    %219 = vmatpush1.msra.mxu0 0.0
    %220 = vmatprep.subr.mxu0 0.0
    %221 = vmatpush1.msra.mxu0 0.0
    %222 = vmatprep.subr.mxu0 0.0
    %223 = vmatpush1.msra.mxu0 0.0
    %224 = vmatprep.subr.mxu0 0.0
    %225 = vmatpush1.msra.mxu0 0.0
    %226 = vmatprep.subr.mxu0 0.0
    %227 = vmatpush1.msra.mxu0 0.0
    %228 = vmatprep.subr.mxu0 0.0
    %229 = vmatpush1.msra.mxu0 0.0
    %230 = vmatprep.subr.mxu0 0.0
    %231 = vmatpush1.msra.mxu0 0.0
    %232 = vmatprep.subr.mxu0 0.0
    %233 = vmatpush1.msra.mxu0 0.0
    %234 = vmatprep.subr.mxu0 0.0
    %235 = vmatpush1.msra.mxu0 0.0
    %236 = vmatprep.mubr.f32.mxu0 0.0
    %237 = vmatmul.mubr.f32.gmra.mrb[0].mxu0 %v170
    %v238 = vpop.f32.mrb[0].mxu0
    %v239 = vadd.f32 %v167, %v238
    %v240 = vpop.f32.mrb[0].mxu0
    %241 = vdwg.mxu0
    %v242 = vlaneseq
    %v243 = vand.u32 %v242, 127
    %vm244 = vcmp.lt.s32.totalorder %v243, 8
    %v245 = vmul.f32 %v239, 1.442695
    %v246 = vpow.pop %v245
    %v247 = vsel %vm244, %v239, %v246
    %248 = vst.msk [vmem:[#allocation2] sm:$0xff] %vm44, %v247
    // Predicated region
    $region30: #{tpu_custom_call.1} parent=1 // pred_check
      _
    $region31: #{tpu_custom_call.1} parent=1 // pred_check_branch
      %250 = sbr.rel (0) target = $region33
    $region32: #{tpu_custom_call.1} parent=1 // pred_region
      %s252 = ssub.s32 128, 128
      %253 = vsyncadd [#allocation3], %s252
      %s255 = sshll.u32 [#allocation2], 4
      %s256 = int_to_ptr.vmem [resolvable:$true] %s255
      %258 = dma.vmem_to_hbm [thread:$0]  %s256, 128, %s7, [#allocation3]
    $region33: #{tpu_custom_call.1} parent=1 // pred_fallthru
      _
    // Predicated region
    $region34: #{tpu_custom_call.1} parent=1 // pred_check
      _
    $region35: #{tpu_custom_call.1} parent=1 // pred_check_branch
      %260 = sbr.rel (0) target = $region37
    $region36: #{tpu_custom_call.1} parent=1 // pred_region
      %261 = dma.done [#allocation3], 128
    $region37: #{tpu_custom_call.1} parent=1 // pred_fallthru
      _
    %262 = vsyncpa [#allocation3], 1

// kernel: tpu_custom_call.1
$region0: #{tpu_custom_call.1}
  #allocation0 [shape = 'u32[]', space=smem, size = 0x4, offset = 0x4, fixed_abs, tag = 'smem constant byte address 0x4 - core index']
  #allocation1 [shape = 'u32[144,128]{1,0:T(1,128)}', space=vmem, size = 0x12000, scoped, tag = 'internal scratch']
  %s0 = inlined_call_operand.vmem [shape: bf16[8,16], index: 0, kind: input, shape index: {}]
  %s1 = inlined_call_operand.vmem [shape: bf16[16,32], index: 1, kind: input, shape index: {}]
  %s2 = inlined_call_operand.vmem [shape: f32[1,32], index: 2, kind: input, shape index: {}]
  %s3 = inlined_call_operand.vmem [shape: bf16[32,32], index: 3, kind: input, shape index: {}]
  %s4 = inlined_call_operand.vmem [shape: f32[1,32], index: 4, kind: input, shape index: {}]
  %s5 = inlined_call_operand.vmem [shape: f32[32,16], index: 5, kind: input, shape index: {}]
  %s6 = inlined_call_operand.vmem [shape: f32[1,16], index: 6, kind: input, shape index: {}]
  %s7 = inlined_call_operand.hbm [shape: f32[8,16], index: 7, kind: output, shape index: {}]
  %s8 = sld [smem:[#allocation0]]
  $region38: #{tpu_custom_call.1} parent=0
    _
  %s10 = ssub.s32 1, %s8
  %s11 = scalar_select 0, %s10, %s8
  $region1: #{tpu_custom_call.1} parent=0
    #allocation2 [shape = 'u8[4096]{0}', space=vmem, size = 0x1000, scoped, tag = 'output window, operand 0, single buffered']
    #allocation3 [shape = 's32[1]{0}', space=sflag, size = 0x4, scoped, tag = 'scoped memory for tpu_custom_call.1']
    %12 = vsyncpa [#allocation3], 0
    // Predicated region
    $region2: #{tpu_custom_call.1} parent=1 // pred_check
      _
    $region3: #{tpu_custom_call.1} parent=1 // pred_check_branch
      %14 = sbr.rel (0) target = $region5
    $region4: #{tpu_custom_call.1} parent=1 // pred_region
      _
    $region5: #{tpu_custom_call.1} parent=1 // pred_fallthru
      _
    // Predicated region
    $region6: #{tpu_custom_call.1} parent=1 // pred_check
      _
    $region7: #{tpu_custom_call.1} parent=1 // pred_check_branch
      %16 = sbr.rel (0) target = $region9
    $region8: #{tpu_custom_call.1} parent=1 // pred_region
      _
    $region9: #{tpu_custom_call.1} parent=1 // pred_fallthru
      _
    // Predicated region
    $region10: #{tpu_custom_call.1} parent=1 // pred_check
      _
    $region11: #{tpu_custom_call.1} parent=1 // pred_check_branch
      %18 = sbr.rel (0) target = $region13
    $region12: #{tpu_custom_call.1} parent=1 // pred_region
      _
    $region13: #{tpu_custom_call.1} parent=1 // pred_fallthru
      _
    // Predicated region
    $region14: #{tpu_custom_call.1} parent=1 // pred_check
      _
    $region15: #{tpu_custom_call.1} parent=1 // pred_check_branch
      %20 = sbr.rel (0) target = $region17
    $region16: #{tpu_custom_call.1} parent=1 // pred_region
      _
    $region17: #{tpu_custom_call.1} parent=1 // pred_fallthru
      _
    // Predicated region
    $region18: #{tpu_custom_call.1} parent=1 // pred_check
      _
    $region19: #{tpu_custom_call.1} parent=1 // pred_check_branch
      %22 = sbr.rel (0) target = $region21
    $region20: #{tpu_custom_call.1} parent=1 // pred_region
      _
    $region21: #{tpu_custom_call.1} parent=1 // pred_fallthru
      _
    // Predicated region
    $region22: #{tpu_custom_call.1} parent=1 // pred_check
      _
    $region23: #{tpu_custom_call.1} parent=1 // pred_check_branch
      %24 = sbr.rel (0) target = $region25
    $region24: #{tpu_custom_call.1} parent=1 // pred_region
      _
    $region25: #{tpu_custom_call.1} parent=1 // pred_fallthru
      _
    // Predicated region
    $region26: #{tpu_custom_call.1} parent=1 // pred_check
      _
    $region27: #{tpu_custom_call.1} parent=1 // pred_check_branch
      %26 = sbr.rel (0) target = $region29
    $region28: #{tpu_custom_call.1} parent=1 // pred_region
      _
    $region29: #{tpu_custom_call.1} parent=1 // pred_fallthru
      _
    %v28 = vld [vmem:[%s0] sm:$0xf]
    %v29 = vld [vmem:[%s1] sm:$0xf]
    %v30 = vld [vmem:[%s1 + $0x4] sm:$0xf]
    %v31 = vld [vmem:[%s2] sm:$0x1]
    %v33 = vlaneseq
    %v34 = vshrl.u32 %v33, 7
    %v35 = vsub.s32 0, %v34
    %v36 = vrot.slane %v31, %v35
    %v40 = vunpack.c.l.b16 %v29
    %v41 = vunpack.c.l.b16 %v30
    %v42 = vpack.c.b16 %v41, %v40
    %vm44 = vcmask 130048
    %v46 = vsel %vm44, %v28, 0
    %48 = vmatprep.subr.bf16.mxu0 0
    %49 = vmatpush1.bf16.msra.mxu0 %v42
    %50 = vmatprep.subr.bf16.mxu0 0
    %51 = vmatpush1.bf16.msra.mxu0 0
    %52 = vmatprep.subr.bf16.mxu0 0
    %53 = vmatpush1.bf16.msra.mxu0 0
    %54 = vmatprep.subr.bf16.mxu0 0
    %55 = vmatpush1.bf16.msra.mxu0 0
    %56 = vmatprep.subr.bf16.mxu0 0
    %57 = vmatpush1.bf16.msra.mxu0 0
    %58 = vmatprep.subr.bf16.mxu0 0
    %59 = vmatpush1.bf16.msra.mxu0 0
    %60 = vmatprep.subr.bf16.mxu0 0
    %61 = vmatpush1.bf16.msra.mxu0 0
    %62 = vmatprep.subr.bf16.mxu0 0
    %63 = vmatpush1.bf16.msra.mxu0 0
    %64 = vmatprep.subr.bf16.mxu0 0
    %65 = vmatpush1.bf16.msra.mxu0 0
    %66 = vmatprep.subr.bf16.mxu0 0
    %67 = vmatpush1.bf16.msra.mxu0 0
    %68 = vmatprep.subr.bf16.mxu0 0
    %69 = vmatpush1.bf16.msra.mxu0 0
    %70 = vmatprep.subr.bf16.mxu0 0
    %71 = vmatpush1.bf16.msra.mxu0 0
    %72 = vmatprep.subr.bf16.mxu0 0
    %73 = vmatpush1.bf16.msra.mxu0 0
    %74 = vmatprep.subr.bf16.mxu0 0
    %75 = vmatpush1.bf16.msra.mxu0 0
    %76 = vmatprep.subr.bf16.mxu0 0
    %77 = vmatpush1.bf16.msra.mxu0 0
    %78 = vmatprep.subr.bf16.mxu0 0
    %79 = vmatpush1.bf16.msra.mxu0 0
    %80 = vmatprep.mubr.bf16.mxu0 0
    %81 = vmatmul.mubr.bf16.gmra.mrb[0].mxu0 %v46
    %v82 = vpop.f32.mrb[0].mxu0
    %v83 = vadd.f32 %v36, %v82
    %v84 = vpop.f32.mrb[0].mxu0
    %v85 = vpop.f32.mrb[0].mxu0
    %v86 = vpop.f32.mrb[0].mxu0
    %87 = vdwg.mxu0
    %v88 = vmax.f32 %v83, 0.0
    %v89 = vpack.c.bf16 %v88, %v88
    %v90 = vld [vmem:[%s3] sm:$0xf]
    %v91 = vld [vmem:[%s3 + $0x4] sm:$0xf]
    %v92 = vld [vmem:[%s3 + $0x8] sm:$0xf]
    %v93 = vld [vmem:[%s3 + $0xc] sm:$0xf]
    %v94 = vld [vmem:[%s4] sm:$0x1]
    %v96 = vlaneseq
    %v97 = vshrl.u32 %v96, 7
    %v98 = vsub.s32 0, %v97
    %v99 = vrot.slane %v94, %v98
    %v105 = vunpack.c.l.b16 %v90
    %v106 = vunpack.c.l.b16 %v91
    %v107 = vunpack.c.l.b16 %v92
    %v108 = vunpack.c.l.b16 %v93
    %v109 = vpack.c.b16 %v106, %v105
    %v110 = vpack.c.b16 %v108, %v107
    %vm113 = vcmask 261120
    %v115 = vsel %vm113, %v89, 0
    %117 = vmatprep.subr.bf16.mxu0 0
    %118 = vmatpush1.bf16.msra.mxu0 %v109
    %119 = vmatprep.subr.bf16.mxu0 0
    %120 = vmatpush1.bf16.msra.mxu0 %v110
    %121 = vmatprep.subr.bf16.mxu0 0
    %122 = vmatpush1.bf16.msra.mxu0 0
    %123 = vmatprep.subr.bf16.mxu0 0
    %124 = vmatpush1.bf16.msra.mxu0 0
    %125 = vmatprep.subr.bf16.mxu0 0
    %126 = vmatpush1.bf16.msra.mxu0 0
    %127 = vmatprep.subr.bf16.mxu0 0
    %128 = vmatpush1.bf16.msra.mxu0 0
    %129 = vmatprep.subr.bf16.mxu0 0
    %130 = vmatpush1.bf16.msra.mxu0 0
    %131 = vmatprep.subr.bf16.mxu0 0
    %132 = vmatpush1.bf16.msra.mxu0 0
    %133 = vmatprep.subr.bf16.mxu0 0
    %134 = vmatpush1.bf16.msra.mxu0 0
    %135 = vmatprep.subr.bf16.mxu0 0
    %136 = vmatpush1.bf16.msra.mxu0 0
    %137 = vmatprep.subr.bf16.mxu0 0
    %138 = vmatpush1.bf16.msra.mxu0 0
    %139 = vmatprep.subr.bf16.mxu0 0
    %140 = vmatpush1.bf16.msra.mxu0 0
    %141 = vmatprep.subr.bf16.mxu0 0
    %142 = vmatpush1.bf16.msra.mxu0 0
    %143 = vmatprep.subr.bf16.mxu0 0
    %144 = vmatpush1.bf16.msra.mxu0 0
    %145 = vmatprep.subr.bf16.mxu0 0
    %146 = vmatpush1.bf16.msra.mxu0 0
    %147 = vmatprep.subr.bf16.mxu0 0
    %148 = vmatpush1.bf16.msra.mxu0 0
    %149 = vmatprep.mubr.bf16.mxu0 0
    %150 = vmatmul.mubr.bf16.gmra.mrb[0].mxu0 %v115
    %v151 = vpop.f32.mrb[0].mxu0
    %v152 = vadd.f32 %v99, %v151
    %v153 = vpop.f32.mrb[0].mxu0
    %v154 = vpop.f32.mrb[0].mxu0
    %v155 = vpop.f32.mrb[0].mxu0
    %156 = vdwg.mxu0
    %v157 = vmax.f32 %v152, 0.0
    %v158 = vld [vmem:[%s5] sm:$0xff]
    %v159 = vld [vmem:[%s5 + $0x8] sm:$0xff]
    %v160 = vld [vmem:[%s5 + $0x10] sm:$0xff]
    %v161 = vld [vmem:[%s5 + $0x18] sm:$0xff]
    %v162 = vld [vmem:[%s6] sm:$0x1]
    %v164 = vlaneseq
    %v165 = vshrl.u32 %v164, 7
    %v166 = vsub.s32 0, %v165
    %v167 = vrot.slane %v162, %v166
    %v170 = vsel %vm113, %v157, 0
    %172 = vmatprep.subr.mxu0 0.0
    %173 = vmatpush1.msra.mxu0 %v158
    %174 = vmatprep.subr.mxu0 0.0
    %175 = vmatpush1.msra.mxu0 %v159
    %176 = vmatprep.subr.mxu0 0.0
    %177 = vmatpush1.msra.mxu0 %v160
    %178 = vmatprep.subr.mxu0 0.0
    %179 = vmatpush1.msra.mxu0 %v161
    %180 = vmatprep.subr.mxu0 0.0
    %181 = vmatpush1.msra.mxu0 0.0
    %182 = vmatprep.subr.mxu0 0.0
    %183 = vmatpush1.msra.mxu0 0.0
    %184 = vmatprep.subr.mxu0 0.0
    %185 = vmatpush1.msra.mxu0 0.0
    %186 = vmatprep.subr.mxu0 0.0
    %187 = vmatpush1.msra.mxu0 0.0
    %188 = vmatprep.subr.mxu0 0.0
    %189 = vmatpush1.msra.mxu0 0.0
    %190 = vmatprep.subr.mxu0 0.0
    %191 = vmatpush1.msra.mxu0 0.0
    %192 = vmatprep.subr.mxu0 0.0
    %193 = vmatpush1.msra.mxu0 0.0
    %194 = vmatprep.subr.mxu0 0.0
    %195 = vmatpush1.msra.mxu0 0.0
    %196 = vmatprep.subr.mxu0 0.0
    %197 = vmatpush1.msra.mxu0 0.0
    %198 = vmatprep.subr.mxu0 0.0
    %199 = vmatpush1.msra.mxu0 0.0
    %200 = vmatprep.subr.mxu0 0.0
    %201 = vmatpush1.msra.mxu0 0.0
    %202 = vmatprep.subr.mxu0 0.0
    %203 = vmatpush1.msra.mxu0 0.0
    %204 = vmatprep.subr.mxu0 0.0
    %205 = vmatpush1.msra.mxu0 0.0
    %206 = vmatprep.subr.mxu0 0.0
    %207 = vmatpush1.msra.mxu0 0.0
    %208 = vmatprep.subr.mxu0 0.0
    %209 = vmatpush1.msra.mxu0 0.0
    %210 = vmatprep.subr.mxu0 0.0
    %211 = vmatpush1.msra.mxu0 0.0
    %212 = vmatprep.subr.mxu0 0.0
    %213 = vmatpush1.msra.mxu0 0.0
    %214 = vmatprep.subr.mxu0 0.0
    %215 = vmatpush1.msra.mxu0 0.0
    %216 = vmatprep.subr.mxu0 0.0
    %217 = vmatpush1.msra.mxu0 0.0
    %218 = vmatprep.subr.mxu0 0.0
    %219 = vmatpush1.msra.mxu0 0.0
    %220 = vmatprep.subr.mxu0 0.0
    %221 = vmatpush1.msra.mxu0 0.0
    %222 = vmatprep.subr.mxu0 0.0
    %223 = vmatpush1.msra.mxu0 0.0
    %224 = vmatprep.subr.mxu0 0.0
    %225 = vmatpush1.msra.mxu0 0.0
    %226 = vmatprep.subr.mxu0 0.0
    %227 = vmatpush1.msra.mxu0 0.0
    %228 = vmatprep.subr.mxu0 0.0
    %229 = vmatpush1.msra.mxu0 0.0
    %230 = vmatprep.subr.mxu0 0.0
    %231 = vmatpush1.msra.mxu0 0.0
    %232 = vmatprep.subr.mxu0 0.0
    %233 = vmatpush1.msra.mxu0 0.0
    %234 = vmatprep.subr.mxu0 0.0
    %235 = vmatpush1.msra.mxu0 0.0
    %236 = vmatprep.mubr.f32.mxu0 0.0
    %237 = vmatmul.mubr.f32.gmra.mrb[0].mxu0 %v170
    %v238 = vpop.f32.mrb[0].mxu0
    %v239 = vadd.f32 %v167, %v238
    %v240 = vpop.f32.mrb[0].mxu0
    %241 = vdwg.mxu0
    %v242 = vlaneseq
    %v243 = vand.u32 %v242, 127
    %vm244 = vcmp.lt.s32.totalorder %v243, 8
    %v245 = vmul.f32 %v239, 1.442695
    %v246 = vpow.pop %v245
    %v247 = vsel %vm244, %v239, %v246
    %248 = vst.msk [vmem:[#allocation2] sm:$0xff] %vm44, %v247
    // Predicated region
    $region30: #{tpu_custom_call.1} parent=1 // pred_check
      _
    $region31: #{tpu_custom_call.1} parent=1 // pred_check_branch
      %250 = sbr.rel (0) target = $region33
    $region32: #{tpu_custom_call.1} parent=1 // pred_region
      %s252 = ssub.s32 128, 128
      %253 = vsyncadd [#allocation3], %s252
      %s255 = sshll.u32 [#allocation2], 4
      %s256 = int_to_ptr.vmem [resolvable:$true] %s255
      %258 = dma.vmem_to_hbm [thread:$0]  %s256, 128, %s7, [#allocation3]
    $region33: #{tpu_custom_call.1} parent=1 // pred_fallthru
      _
    // Predicated region
    $region34: #{tpu_custom_call.1} parent=1 // pred_check
      _
    $region35: #{tpu_custom_call.1} parent=1 // pred_check_branch
      %260 = sbr.rel (0) target = $region37
    $region36: #{tpu_custom_call.1} parent=1 // pred_region
      %261 = dma.done [#allocation3], 128
    $region37: #{tpu_custom_call.1} parent=1 // pred_fallthru
      _
    %262 = vsyncpa [#allocation3], 1

</llo_original>
